<compile_context>
chip_gen: v5e
topology: v5e:2x2
jax: 0.10.0
libtpu: 0.0.40
codegen_flags: <defaults>
</compile_context>

<pallas_src>
import functools

import jax
import jax.numpy as jnp
from jax.experimental import pallas as pl
from jax.experimental.pallas import tpu as pltpu


def _round_up(x, m):
    return (x + m - 1) // m * m


def _pick_tile(dim, candidates):
    """Largest candidate that divides dim (dim is pre-padded so one always does)."""
    for c in candidates:
        if dim % c == 0:
            return c
    return dim


def _make_kernel(tk, x_resident):
    def kernel(x_ref, w_ref, b_ref, o_ref, acc_ref):
        # x_ref: (tm, K_pad) resident panel  OR  (tm, tk) streamed block (bf16)
        # w_ref: (tk, tn) fused [K, world_size*out_pp] weight tile (bf16)
        # b_ref: (1, tn)  f32 bias tile
        # o_ref: (tm, tn) output tile (caller dtype)
        # acc_ref: (tm, tn) f32 accumulator, persists across K steps
        ki = pl.program_id(2)

        @pl.when(ki == 0)
        def _():
            acc_ref[...] = jnp.zeros_like(acc_ref)

        if x_resident:
            ks = pl.multiple_of(ki * tk, tk)
            x_blk = x_ref[:, pl.ds(ks, tk)]
        else:
            x_blk = x_ref[...]

        # bf16 x bf16 -> f32 accumulate on the MXU, stored-layout feed (no transpose).
        acc_ref[...] += jnp.dot(x_blk, w_ref[...], preferred_element_type=jnp.float32)

        @pl.when(ki == pl.num_programs(2) - 1)
        def _():
            # Bias add + cast only in the epilogue.
            o_ref[...] = (acc_ref[...] + b_ref[...]).astype(o_ref.dtype)

    return kernel


def prepare_column_parallel_params(weight_shards, bias_shards,
                                   param_dtype=jnp.bfloat16):
    """ONE-TIME layout plumbing (call at init, NOT in the per-step forward path).

    Args:
      weight_shards: [world_size, out_pp, input_size]  (torch F.linear layout)
      bias_shards:   [world_size, 1, out_pp] (or [world_size, out_pp])
    Returns:
      w_fused: [K_pad, N_pad] param_dtype   (K lane-contracted, N lane-dense,
               column c = r*out_pp + j  == all_gather + concat ordering)
      b_fused: [1, N_pad] float32
      n_valid: world_size * out_pp  (real output columns)
    """
    world_size, out_pp, k_dim = weight_shards.shape
    n_total = world_size * out_pp

    # [ws, out_pp, K] -> [K, ws*out_pp]: rank axis fused into N, out on lanes.
    w = jnp.transpose(weight_shards, (2, 0, 1)).reshape(k_dim, n_total)
    b = bias_shards.reshape(1, n_total).astype(jnp.float32)

    k_pad = _round_up(k_dim, 128)
    n_pad = _round_up(n_total, 128)
    if (k_pad, n_pad) != (k_dim, n_total):
        w = jnp.pad(w, ((0, k_pad - k_dim), (0, n_pad - n_total)))
        b = jnp.pad(b, ((0, 0), (0, n_pad - n_total)))

    return w.astype(param_dtype), b, n_total


def column_parallel_linear(x, w_fused, b_fused, n_valid,
                           compute_dtype=jnp.bfloat16):
    """Forward of ColumnParallelLinear over pre-laid-out fused parameters.

    Args:
      x:       [batch, seq, input_size]
      w_fused: [K_pad, N_pad]  (from prepare_column_parallel_params)
      b_fused: [1, N_pad] f32
      n_valid: real number of output columns (= world_size * out_pp)
    Returns:
      [batch, seq, n_valid]  in x.dtype
    """
    batch, seq, input_size = x.shape
    k_pad, n_pad = w_fused.shape
    out_dtype = x.dtype

    m = batch * seq
    x2d = x.reshape(m, input_size).astype(compute_dtype)
    if k_pad != input_size:
        # Zero K padding contributes 0 to the contraction.
        x2d = jnp.pad(x2d, ((0, 0), (0, k_pad - input_size)))

    # ---- tile plan --------------------------------------------------------
    # M: minimal padding to the bf16 sublane pack (16); tm <= 512.
    m_pad = _round_up(m, 16)
    tm = _pick_tile(m_pad, (512, 256, 128, 64, 32, 16))
    if m_pad != m:
        x2d = jnp.pad(x2d, ((0, m_pad - m), (0, 0)))

    # N: lane-dense tiles; rank axis already fused so tn >= 256 when possible
    #    (fills the 256x256 MXU on v6e/v7x; v5e is indifferent).
    tn = _pick_tile(n_pad, (512, 256, 128))
    # K: fat reduction tiles to amortize the f32 accumulator RMW per step.
    tk = _pick_tile(k_pad, (2048, 1024, 512, 256, 128))

    in_itemsize = jnp.dtype(compute_dtype).itemsize
    out_itemsize = jnp.dtype(out_dtype).itemsize

    # Resident activation row-panel if the double-buffered panel fits budget.
    x_panel_bytes = 2 * tm * k_pad * in_itemsize
    x_resident = x_panel_bytes <= 24 * 1024 * 1024

    grid = (m_pad // tm, n_pad // tn, k_pad // tk)

    if x_resident:
        x_spec = pl.BlockSpec((tm, k_pad), lambda mi, ni, ki: (mi, 0))
        x_bytes = 2 * tm * k_pad * in_itemsize
        x_hbm_reads = m_pad * k_pad * in_itemsize
    else:
        x_spec = pl.BlockSpec((tm, tk), lambda mi, ni, ki: (mi, ki))
        x_bytes = 2 * tm * tk * in_itemsize
        x_hbm_reads = m_pad * k_pad * (n_pad // tn) * in_itemsize

    # Double-buffered VMEM footprint -> limit (cap 48 MiB: safe on v7x's 64 MiB).
    footprint = (
        x_bytes
        + 2 * tk * tn * in_itemsize          # weight tile
        + 2 * 1 * tn * 4                     # bias tile
        + 2 * tm * tn * out_itemsize         # output tile
        + tm * tn * 4                        # f32 accumulator scratch
    )
    vmem_limit = min(48 * 1024 * 1024, max(32 * 1024 * 1024, int(footprint * 5 // 4)))

    cost = pl.CostEstimate(
        flops=2 * m_pad * k_pad * n_pad,
        transcendentals=0,
        bytes_accessed=(
            x_hbm_reads
            + (m_pad // tm) * k_pad * n_pad * in_itemsize   # weights per M sweep
            + (m_pad // tm) * n_pad * 4                     # bias
            + m_pad * n_pad * out_itemsize                  # output
        ),
    )

    out = pl.pallas_call(
        _make_kernel(tk, x_resident),
        out_shape=jax.ShapeDtypeStruct((m_pad, n_pad), out_dtype),
        grid_spec=pltpu.PrefetchScalarGridSpec(
            num_scalar_prefetch=0,
            grid=grid,
            in_specs=[
                x_spec,
                pl.BlockSpec((tk, tn), lambda mi, ni, ki: (ki, ni)),
                pl.BlockSpec((1, tn), lambda mi, ni, ki: (0, ni)),
            ],
            out_specs=pl.BlockSpec((tm, tn), lambda mi, ni, ki: (mi, ni)),
            scratch_shapes=[pltpu.VMEM((tm, tn), jnp.float32)],
        ),
        compiler_params=pltpu.CompilerParams(
            dimension_semantics=("parallel", "parallel", "arbitrary"),
            vmem_limit_bytes=vmem_limit,
        ),
        cost_estimate=cost,
    )(x2d, w_fused, b_fused)

    out = out[:m, :n_valid]                 # drop M padding + padded columns
    return out.reshape(batch, seq, n_valid)


if __name__ == "__main__":
    # Small shapes consistent with the module's forward.
    batch, seq = 2, 8
    input_size = 32
    world_size = 2
    output_size = 256                       # divisible by world_size
    out_pp = output_size // world_size      # 128 per rank

    key = jax.random.PRNGKey(0)
    kx, kw, kb = jax.random.split(key, 3)

    x = jax.random.normal(kx, (batch, seq, input_size), dtype=jnp.float32)
    # Deterministic parameter init (torch.empty in __init__ is uninitialized;
    # we use a fixed normal init here).
    weight_shards = (
        jax.random.normal(kw, (world_size, out_pp, input_size), dtype=jnp.float32)
        * 0.02
    )
    bias_shards = (
        jax.random.normal(kb, (world_size, 1, out_pp), dtype=jnp.float32) * 0.02
    )

    # One-time layout / bf16 cast (hoisted out of the forward hot path).
    w_fused, b_fused, n_valid = prepare_column_parallel_params(
        weight_shards, bias_shards, param_dtype=jnp.bfloat16
    )

    fwd = jax.jit(functools.partial(column_parallel_linear, n_valid=n_valid))
    y = fwd(x, w_fused, b_fused)
    y = jax.block_until_ready(y)

    # Reference: full linear with concatenated weight/bias (what the all-gather
    # produces across ranks).  Inputs are bf16-quantized to match the kernel's
    # compute dtype; accumulation in f32.
    xq = x.astype(jnp.bfloat16).astype(jnp.float32)
    wq = weight_shards.astype(jnp.bfloat16).astype(jnp.float32)
    w_full = jnp.transpose(wq, (2, 0, 1)).reshape(input_size, world_size * out_pp)
    b_full = bias_shards.reshape(world_size * out_pp)
    y_ref = (
        jnp.einsum("bsk,ko->bso", xq, w_full, precision=jax.lax.Precision.HIGHEST)
        + b_full
    )

    assert y.shape == (batch, seq, output_size)
    assert jnp.allclose(y, y_ref, atol=2e-2, rtol=2e-2), (
        float(jnp.max(jnp.abs(y - y_ref)))
    )
    print("KERNEL_OK")
</pallas_src>

<mosaic_0001>
module attributes {stable_mosaic.version = 11 : i64} {
  func.func @kernel(%arg0: i32, %arg1: i32, %arg2: i32, %arg3: memref<16x128xbf16, #tpu.memory_space<vmem>>, %arg4: memref<128x256xbf16, #tpu.memory_space<vmem>>, %arg5: memref<1x256xf32, #tpu.memory_space<vmem>>, %arg6: memref<16x256xf32, #tpu.memory_space<vmem>>, %arg7: memref<16x256xf32, #tpu.memory_space<vmem>>) attributes {dimension_semantics = [#tpu.dimension_semantics<parallel>, #tpu.dimension_semantics<parallel>, #tpu.dimension_semantics<arbitrary>], iteration_bounds = array<i64: 1, 1, 1>, scalar_prefetch = 0 : i64, scratch_operands = 1 : i64, tpu.core_type = #tpu.core_type<tc>, window_params = [{transform_indices = @transform_0, window_bounds = array<i64: 16, 128>}, {transform_indices = @transform_1, window_bounds = array<i64: 128, 256>}, {transform_indices = @transform_2, window_bounds = array<i64: 1, 256>}, {transform_indices = @transform_3, window_bounds = array<i64: 16, 256>}]} {
    %c0_i32 = arith.constant 0 : i32
    %0 = arith.cmpi eq, %arg2, %c0_i32 : i32
    %1 = arith.extui %0 : i1 to i32
    %c0_i32_0 = arith.constant 0 : i32
    %2 = arith.cmpi ne, %1, %c0_i32_0 : i32
    scf.if %2 {
      %cst_9 = arith.constant 0.000000e+00 : f32
      %15 = vector.broadcast %cst_9 : f32 to vector<16x256xf32>
      %c0_10 = arith.constant 0 : index
      %c0_11 = arith.constant 0 : index
      %16 = vector.load %arg7[%c0_10, %c0_11] : memref<16x256xf32, #tpu.memory_space<vmem>>, vector<16x256xf32>
      tpu.vector_store %arg7[%c0_10, %c0_11], %15 {strides = array<i32>} : memref<16x256xf32, #tpu.memory_space<vmem>>, vector<16x256xf32>,
    } else {
    }
    %c128_i32 = arith.constant 128 : i32
    %3 = arith.muli %arg2, %c128_i32 : i32
    %4 = tpu.assume_multiple %3, 128 : i32
    %c0 = arith.constant 0 : index
    %5 = arith.index_cast %4 : i32 to index
    %6 = vector.load %arg3[%c0, %5] : memref<16x128xbf16, #tpu.memory_space<vmem>>, vector<16x128xbf16>
    %c0_1 = arith.constant 0 : index
    %c0_2 = arith.constant 0 : index
    %7 = vector.load %arg7[%c0_1, %c0_2] : memref<16x256xf32, #tpu.memory_space<vmem>>, vector<16x256xf32>
    %c0_3 = arith.constant 0 : index
    %c0_4 = arith.constant 0 : index
    %8 = vector.load %arg4[%c0_3, %c0_4] : memref<128x256xbf16, #tpu.memory_space<vmem>>, vector<128x256xbf16>
    %cst = arith.constant dense<0.000000e+00> : vector<16x256xf32>
    %9 = tpu.matmul %6, %8, %cst {dimension_numbers = #tpu.dot_dimension_numbers<[1], [0], [0], [1], [0, 0, 1, 1], [], []>} : vector<16x128xbf16>, vector<128x256xbf16>, vector<16x256xf32> -> vector<16x256xf32>
    %10 = arith.addf %7, %9 : vector<16x256xf32>
    %c0_5 = arith.constant 0 : index
    %c0_6 = arith.constant 0 : index
    %11 = vector.load %arg7[%c0_5, %c0_6] : memref<16x256xf32, #tpu.memory_space<vmem>>, vector<16x256xf32>
    tpu.vector_store %arg7[%c0_5, %c0_6], %10 {strides = array<i32>} : memref<16x256xf32, #tpu.memory_space<vmem>>, vector<16x256xf32>,
    %c0_i32_7 = arith.constant 0 : i32
    %12 = arith.cmpi eq, %arg2, %c0_i32_7 : i32
    %13 = arith.extui %12 : i1 to i32
    %c0_i32_8 = arith.constant 0 : i32
    %14 = arith.cmpi ne, %13, %c0_i32_8 : i32
    scf.if %14 {
      %c0_9 = arith.constant 0 : index
      %c0_10 = arith.constant 0 : index
      %15 = vector.load %arg7[%c0_9, %c0_10] : memref<16x256xf32, #tpu.memory_space<vmem>>, vector<16x256xf32>
      %c0_11 = arith.constant 0 : index
      %c0_12 = arith.constant 0 : index
      %16 = vector.load %arg5[%c0_11, %c0_12] : memref<1x256xf32, #tpu.memory_space<vmem>>, vector<1x256xf32>
      %17 = vector.broadcast %16 : vector<1x256xf32> to vector<16x256xf32>
      %18 = arith.addf %15, %17 : vector<16x256xf32>
      %c0_13 = arith.constant 0 : index
      %c0_14 = arith.constant 0 : index
      %19 = vector.load %arg6[%c0_13, %c0_14] : memref<16x256xf32, #tpu.memory_space<vmem>>, vector<16x256xf32>
      tpu.vector_store %arg6[%c0_13, %c0_14], %18 {strides = array<i32>} : memref<16x256xf32, #tpu.memory_space<vmem>>, vector<16x256xf32>,
    } else {
    }
    return
  }
  func.func @transform_0(%arg0: i32, %arg1: i32, %arg2: i32) -> (i32, i32) {
    %c0_i32 = arith.constant 0 : i32
    %c0_i32_0 = arith.constant 0 : i32
    return %arg0, %c0_i32 : i32, i32
  }
  func.func @transform_1(%arg0: i32, %arg1: i32, %arg2: i32) -> (i32, i32) {
    %c0_i32 = arith.constant 0 : i32
    return %arg2, %arg1 : i32, i32
  }
  func.func @transform_2(%arg0: i32, %arg1: i32, %arg2: i32) -> (i32, i32) {
    %c0_i32 = arith.constant 0 : i32
    %c0_i32_0 = arith.constant 0 : i32
    return %c0_i32, %arg1 : i32, i32
  }
  func.func @transform_3(%arg0: i32, %arg1: i32, %arg2: i32) -> (i32, i32) {
    %c0_i32 = arith.constant 0 : i32
    return %arg0, %arg1 : i32, i32
  }
}

</mosaic_0001>

<llo_original>
// kernel: column_parallel_linear.1
$region0: #{column_parallel_linear.1}
  #allocation0 [shape = 'u32[]', space=smem, size = 0x4, offset = 0x4, fixed_abs, tag = 'smem constant byte address 0x4 - core index']
  #allocation1 [shape = 'u32[72,128]{1,0:T(1,128)}', space=vmem, size = 0x9000, scoped, tag = 'internal scratch']
  #allocation2 [shape = 'f32[16,256]{1,0:T(8,128)}', space=vmem, size = 0x4000, scoped, tag = 'scratch operand']
  %s0 = inlined_call_operand.vmem [shape: bf16[16,128], index: 0, kind: input, shape index: {}]
  %s1 = inlined_call_operand.hbm [shape: bf16[128,256], index: 1, kind: input, shape index: {}]
  %s2 = inlined_call_operand.vmem [shape: f32[1,256], index: 2, kind: input, shape index: {}]
  %s3 = inlined_call_operand.hbm [shape: f32[16,256], index: 3, kind: output, shape index: {}]
  %s4 = sld [smem:[#allocation0]]
  $region34: #{column_parallel_linear.1} parent=0
    _
  %s6 = ssub.s32 1, %s4
  %s7 = scalar_select 0, %s6, %s4
  $region1: #{column_parallel_linear.1} parent=0
    #allocation3 [shape = 'u8[65536]{0}', space=vmem, size = 0x10000, scoped, tag = 'input window, operand 1, single buffered']
    #allocation4 [shape = 's32[1]{0}', space=sflag, size = 0x4, scoped, tag = 'scoped memory for column_parallel_linear.1']
    #allocation5 [shape = 's32[1]{0}', space=sflag, size = 0x4, scoped, tag = 'scoped memory for column_parallel_linear.1']
    #allocation6 [shape = 'u8[16384]{0}', space=vmem, size = 0x4000, scoped, tag = 'output window, operand 0, single buffered']
    %8 = vsyncpa [#allocation4], 0
    %9 = vsyncpa [#allocation5], 0
    // Predicated region
    $region2: #{column_parallel_linear.1} parent=1 // pred_check
      _
    $region3: #{column_parallel_linear.1} parent=1 // pred_check_branch
      %11 = sbr.rel (0) target = $region5
    $region4: #{column_parallel_linear.1} parent=1 // pred_region
      _
    $region5: #{column_parallel_linear.1} parent=1 // pred_fallthru
      _
    // Predicated region
    $region6: #{column_parallel_linear.1} parent=1 // pred_check
      _
    $region7: #{column_parallel_linear.1} parent=1 // pred_check_branch
      %13 = sbr.rel (0) target = $region9
    $region8: #{column_parallel_linear.1} parent=1 // pred_region
      %15 = vsyncadd [#allocation4], 0
      %s16 = sshll.u32 %s1, 4
      %s17 = int_to_ptr.hbm [resolvable:$true] %s16
      %s18 = sshll.u32 [#allocation3], 4
      %s19 = int_to_ptr.vmem [resolvable:$true] %s18
      %24 = dma.hbm_to_vmem [thread:$0]  %s17, 2048, %s19, [#allocation4], 128, 128, 8
    $region9: #{column_parallel_linear.1} parent=1 // pred_fallthru
      _
    // Predicated region
    $region10: #{column_parallel_linear.1} parent=1 // pred_check
      _
    $region11: #{column_parallel_linear.1} parent=1 // pred_check_branch
      %26 = sbr.rel (0) target = $region13
    $region12: #{column_parallel_linear.1} parent=1 // pred_region
      _
    $region13: #{column_parallel_linear.1} parent=1 // pred_fallthru
      _
    // Predicated region
    $region14: #{column_parallel_linear.1} parent=1 // pred_check
      _
    $region15: #{column_parallel_linear.1} parent=1 // pred_check_branch
      %28 = sbr.rel (0) target = $region17
    $region16: #{column_parallel_linear.1} parent=1 // pred_region
      %30 = dma.done [#allocation4], 2048
    $region17: #{column_parallel_linear.1} parent=1 // pred_fallthru
      _
    %p31 = scmp.eq.s32.totalorder 0, 0
    // Predicated region
    $region18: #{column_parallel_linear.1} parent=1 // pred_check
      %p32 = pneg %p31
    $region19: #{column_parallel_linear.1} parent=1 // pred_check_branch
      %34 = sbr.rel (%p32) target = $region21
    $region20: #{column_parallel_linear.1} parent=1 // pred_region
      %35 = vst [vmem:[#allocation2] sm:$0xff] 0.0
      %36 = vst [vmem:[#allocation2 + $0x8] sm:$0xff] 0.0
      %37 = vst [vmem:[#allocation2 + $0x10] sm:$0xff] 0.0
      %38 = vst [vmem:[#allocation2 + $0x18] sm:$0xff] 0.0
    $region21: #{column_parallel_linear.1} parent=1 // pred_fallthru
      _
    %s39 = smul.u32 0, 128
    %s40 = sshra.s32 %s39, 7
    %s41 = sand.u32 %s39, 127
    %s42 = smul.addr %s40, 4
    %s43 = scalar_lea.vmem %s0, %s42
    %v44 = vld [vmem:[%s43] sm:$0xf]
    %v45 = vld [vmem:[%s43 + $0x4] sm:$0xf]
    %v46 = vld [vmem:[#allocation2] sm:$0xff]
    %v47 = vld [vmem:[#allocation2 + $0x8] sm:$0xff]
    %v48 = vld [vmem:[#allocation2 + $0x10] sm:$0xff]
    %v49 = vld [vmem:[#allocation2 + $0x18] sm:$0xff]
    %v50 = vld [vmem:[#allocation3] sm:$0xff]
    %v51 = vld [vmem:[#allocation3 + $0x8] sm:$0xff]
    %v52 = vld [vmem:[#allocation3 + $0x10] sm:$0xff]
    %v53 = vld [vmem:[#allocation3 + $0x18] sm:$0xff]
    %v54 = vld [vmem:[#allocation3 + $0x20] sm:$0xff]
    %v55 = vld [vmem:[#allocation3 + $0x28] sm:$0xff]
    %v56 = vld [vmem:[#allocation3 + $0x30] sm:$0xff]
    %v57 = vld [vmem:[#allocation3 + $0x38] sm:$0xff]
    %v58 = vld [vmem:[#allocation3 + $0x40] sm:$0xff]
    %v59 = vld [vmem:[#allocation3 + $0x48] sm:$0xff]
    %v60 = vld [vmem:[#allocation3 + $0x50] sm:$0xff]
    %v61 = vld [vmem:[#allocation3 + $0x58] sm:$0xff]
    %v62 = vld [vmem:[#allocation3 + $0x60] sm:$0xff]
    %v63 = vld [vmem:[#allocation3 + $0x68] sm:$0xff]
    %v64 = vld [vmem:[#allocation3 + $0x70] sm:$0xff]
    %v65 = vld [vmem:[#allocation3 + $0x78] sm:$0xff]
    %v68 = vunpack.c.l.b16 %v44
    %v69 = vunpack.c.l.b16 %v45
    %v70 = vpack.c.b16 %v69, %v68
    %v88 = vunpack.c.l.b16 %v50
    %v89 = vunpack.c.h.b16 %v50
    %v90 = vunpack.c.l.b16 %v51
    %v91 = vunpack.c.h.b16 %v51
    %v92 = vunpack.c.l.b16 %v52
    %v93 = vunpack.c.h.b16 %v52
    %v94 = vunpack.c.l.b16 %v53
    %v95 = vunpack.c.h.b16 %v53
    %v96 = vunpack.c.l.b16 %v54
    %v97 = vunpack.c.h.b16 %v54
    %v98 = vunpack.c.l.b16 %v55
    %v99 = vunpack.c.h.b16 %v55
    %v100 = vunpack.c.l.b16 %v56
    %v101 = vunpack.c.h.b16 %v56
    %v102 = vunpack.c.l.b16 %v57
    %v103 = vunpack.c.h.b16 %v57
    %v104 = vunpack.c.l.b16 %v58
    %v105 = vunpack.c.h.b16 %v58
    %v106 = vunpack.c.l.b16 %v59
    %v107 = vunpack.c.h.b16 %v59
    %v108 = vunpack.c.l.b16 %v60
    %v109 = vunpack.c.h.b16 %v60
    %v110 = vunpack.c.l.b16 %v61
    %v111 = vunpack.c.h.b16 %v61
    %v112 = vunpack.c.l.b16 %v62
    %v113 = vunpack.c.h.b16 %v62
    %v114 = vunpack.c.l.b16 %v63
    %v115 = vunpack.c.h.b16 %v63
    %v116 = vunpack.c.l.b16 %v64
    %v117 = vunpack.c.h.b16 %v64
    %v118 = vunpack.c.l.b16 %v65
    %v119 = vunpack.c.h.b16 %v65
    %v120 = vpack.c.b16 %v90, %v88
    %v121 = vpack.c.b16 %v91, %v89
    %v122 = vpack.c.b16 %v94, %v92
    %v123 = vpack.c.b16 %v95, %v93
    %v124 = vpack.c.b16 %v98, %v96
    %v125 = vpack.c.b16 %v99, %v97
    %v126 = vpack.c.b16 %v102, %v100
    %v127 = vpack.c.b16 %v103, %v101
    %v128 = vpack.c.b16 %v106, %v104
    %v129 = vpack.c.b16 %v107, %v105
    %v130 = vpack.c.b16 %v110, %v108
    %v131 = vpack.c.b16 %v111, %v109
    %v132 = vpack.c.b16 %v114, %v112
    %v133 = vpack.c.b16 %v115, %v113
    %v134 = vpack.c.b16 %v118, %v116
    %v135 = vpack.c.b16 %v119, %v117
    %152 = vmatpush.bf16.msra.mxu0 %v134
    %153 = vmatpush.bf16.msra.mxu0 %v132
    %154 = vmatpush.bf16.msra.mxu0 %v130
    %155 = vmatpush.bf16.msra.mxu0 %v128
    %156 = vmatpush.bf16.msra.mxu0 %v126
    %157 = vmatpush.bf16.msra.mxu0 %v124
    %158 = vmatpush.bf16.msra.mxu0 %v122
    %159 = vmatpush.bf16.msra.mxu0 %v120
    %160 = vmatmul.bf16.gmra.mxu0 %v70
    %v161 = vpop.f32.mrf.mxu0
    %v162 = vadd.f32 0.0, %v161
    %v163 = vpop.f32.mrf.mxu0
    %v164 = vadd.f32 0.0, %v163
    %165 = vdwg.mxu0
    %166 = vmatpush.bf16.msra.mxu0 %v135
    %167 = vmatpush.bf16.msra.mxu0 %v133
    %168 = vmatpush.bf16.msra.mxu0 %v131
    %169 = vmatpush.bf16.msra.mxu0 %v129
    %170 = vmatpush.bf16.msra.mxu0 %v127
    %171 = vmatpush.bf16.msra.mxu0 %v125
    %172 = vmatpush.bf16.msra.mxu0 %v123
    %173 = vmatpush.bf16.msra.mxu0 %v121
    %174 = vmatmul.bf16.gmra.mxu0 %v70
    %v175 = vpop.f32.mrf.mxu0
    %v176 = vadd.f32 0.0, %v175
    %v177 = vpop.f32.mrf.mxu0
    %v178 = vadd.f32 0.0, %v177
    %179 = vdwg.mxu0
    %v180 = vadd.f32 %v46, %v162
    %v181 = vadd.f32 %v47, %v176
    %v182 = vadd.f32 %v48, %v164
    %v183 = vadd.f32 %v49, %v178
    %184 = vst [vmem:[#allocation2] sm:$0xff] %v180
    %185 = vst [vmem:[#allocation2 + $0x8] sm:$0xff] %v181
    %186 = vst [vmem:[#allocation2 + $0x10] sm:$0xff] %v182
    %187 = vst [vmem:[#allocation2 + $0x18] sm:$0xff] %v183
    // Predicated region
    $region22: #{column_parallel_linear.1} parent=1 // pred_check
      %p188 = pneg %p31
    $region23: #{column_parallel_linear.1} parent=1 // pred_check_branch
      %190 = sbr.rel (%p188) target = $region25
    $region24: #{column_parallel_linear.1} parent=1 // pred_region
      %v191 = vld [vmem:[#allocation2] sm:$0xff]
      %v192 = vld [vmem:[#allocation2 + $0x8] sm:$0xff]
      %v193 = vld [vmem:[#allocation2 + $0x10] sm:$0xff]
      %v194 = vld [vmem:[#allocation2 + $0x18] sm:$0xff]
      %v195 = vld [vmem:[%s2] sm:$0x3]
      %v197 = vperm.slane %v195, 0
      %v198 = vperm.slane %v195, 1
      %v201 = vadd.f32 %v191, %v197
      %v202 = vadd.f32 %v192, %v198
      %v203 = vadd.f32 %v193, %v197
      %v204 = vadd.f32 %v194, %v198
      %205 = vst [vmem:[#allocation6] sm:$0xff] %v201
      %206 = vst [vmem:[#allocation6 + $0x8] sm:$0xff] %v202
      %207 = vst [vmem:[#allocation6 + $0x10] sm:$0xff] %v203
      %208 = vst [vmem:[#allocation6 + $0x18] sm:$0xff] %v204
    $region25: #{column_parallel_linear.1} parent=1 // pred_fallthru
      _
    // Predicated region
    $region26: #{column_parallel_linear.1} parent=1 // pred_check
      _
    $region27: #{column_parallel_linear.1} parent=1 // pred_check_branch
      %210 = sbr.rel (0) target = $region29
    $region28: #{column_parallel_linear.1} parent=1 // pred_region
      %212 = vsyncadd [#allocation5], 0
      %s213 = sshll.u32 [#allocation6], 4
      %s214 = int_to_ptr.vmem [resolvable:$true] %s213
      %s215 = sshll.u32 %s3, 4
      %s216 = int_to_ptr.hbm [resolvable:$true] %s215
      %221 = dma.vmem_to_hbm [thread:$0]  %s214, 512, %s216, [#allocation5], 256, 256, 16
    $region29: #{column_parallel_linear.1} parent=1 // pred_fallthru
      _
    // Predicated region
    $region30: #{column_parallel_linear.1} parent=1 // pred_check
      _
    $region31: #{column_parallel_linear.1} parent=1 // pred_check_branch
      %223 = sbr.rel (0) target = $region33
    $region32: #{column_parallel_linear.1} parent=1 // pred_region
      %225 = dma.done [#allocation5], 512
    $region33: #{column_parallel_linear.1} parent=1 // pred_fallthru
      _
    %226 = vsyncpa [#allocation4], 1
    %227 = vsyncpa [#allocation5], 1

</llo_original>
